<compile_context>
chip_gen: v5e
topology: v5e:2x2
jax: 0.10.0
libtpu: 0.0.40
codegen_flags: <defaults>
</compile_context>

<pallas_src>
import jax
import jax.numpy as jnp
from jax.experimental import pallas as pl
from jax.experimental.pallas import tpu as pltpu


def _copy_kernel(x_ref, o_ref):
    # Identity copy of the current tile.
    o_ref[...] = x_ref[...]


# Lane widths tried (largest first) — must exactly divide the element count
# so no padding / slicing copies are ever materialized around the kernel.
_LANE_CANDIDATES = (4096, 2048, 1024, 512, 256, 128)
# ~4 MiB per block buffer; in+out double-buffered => <= 16 MiB VMEM.
_TARGET_BLOCK_BYTES = 4 * 1024 * 1024
# Native sublane packing multiples per dtype itemsize.
_SUBLANE_MULTIPLE = {4: 8, 2: 16, 1: 32}


def _resolve_shape(shape, total):
    """Resolve a single -1 like torch.Tensor.view."""
    shape = list(shape)
    if -1 in shape:
        idx = shape.index(-1)
        known = 1
        for i, s in enumerate(shape):
            if i != idx:
                known *= s
        assert known > 0 and total % known == 0, "view shape incompatible"
        shape[idx] = total // known
    prod = 1
    for s in shape:
        prod *= s
    assert prod == total, "view shape incompatible with input size"
    return tuple(shape)


def view_pallas(x, shape):
    """Reproduces torch.Tensor.view(*shape) semantics via one HBM copy."""
    total = x.size
    out_shape = _resolve_shape(shape, total)
    itemsize = jnp.dtype(x.dtype).itemsize
    cost = pl.CostEstimate(
        flops=0, transcendentals=0, bytes_accessed=2 * total * itemsize
    )

    # Pick the widest lane dimension that exactly divides the element count.
    cols = next((c for c in _LANE_CANDIDATES if total % c == 0), None)

    if cols is None:
        # Ragged total (not a multiple of 128): whole-array single-block copy
        # (block_shape == full array dims, so no (8,128) constraint and no
        # padding).  Intended for small tensors only.
        out = pl.pallas_call(
            _copy_kernel,
            out_shape=jax.ShapeDtypeStruct(x.shape, x.dtype),
            cost_estimate=cost,
        )(x)
        return out.reshape(out_shape)

    rows = total // cols
    slab = x.reshape(rows, cols)  # contiguous reshape: metadata-only in XLA

    sub = _SUBLANE_MULTIPLE.get(itemsize, 8)
    max_block_rows = max(
        sub, (_TARGET_BLOCK_BYTES // (cols * itemsize)) // sub * sub
    )
    if rows <= max_block_rows:
        # One block covering the full rows axis (full-dim escape hatch).
        block_rows = rows
    else:
        # Multi-MiB blocks, sublane-aligned; last block may be ragged
        # (Pallas masks the partial edge block).
        block_rows = max_block_rows
    grid = (pl.cdiv(rows, block_rows),)

    out_slab = pl.pallas_call(
        _copy_kernel,
        out_shape=jax.ShapeDtypeStruct((rows, cols), slab.dtype),
        grid_spec=pltpu.PrefetchScalarGridSpec(
            num_scalar_prefetch=0,
            grid=grid,
            in_specs=[pl.BlockSpec((block_rows, cols), lambda i: (i, 0))],
            out_specs=pl.BlockSpec((block_rows, cols), lambda i: (i, 0)),
        ),
        compiler_params=pltpu.CompilerParams(
            dimension_semantics=("parallel",),
            vmem_limit_bytes=32 * 1024 * 1024,
        ),
        cost_estimate=cost,
    )(slab)

    # Apply the requested view shape (metadata-only).
    return out_slab.reshape(out_shape)


class ViewPallas:
    """JAX/Pallas counterpart of the PyTorch `View` nn.Module."""

    def __init__(self, shape):
        self.shape = shape

    def __call__(self, x):
        return view_pallas(x, self.shape)


if __name__ == "__main__":
    key = jax.random.PRNGKey(0)

    # Small NCHW-like input consistent with the module's forward.
    x = jax.random.normal(key, (2, 4, 16, 16), dtype=jnp.float32)
    mod = ViewPallas((2, -1))  # flatten all non-batch dims
    y = jax.block_until_ready(mod(x))
    ref = x.reshape(2, -1)
    assert y.shape == ref.shape and y.dtype == ref.dtype
    assert bool(jnp.all(y == ref))

    # Narrow-dtype path (16-sublane blocks) on a slightly larger slab.
    xb = jax.random.normal(key, (8, 32, 16, 16), dtype=jnp.bfloat16)
    yb = jax.block_until_ready(ViewPallas((8, 32, -1))(xb))
    refb = xb.reshape(8, 32, -1)
    assert yb.shape == refb.shape and yb.dtype == refb.dtype
    assert bool(jnp.all(yb == refb))

    # Ragged element count (not a multiple of 128): whole-array fallback.
    xr = jax.random.normal(key, (3, 5, 7), dtype=jnp.float32)
    yr = jax.block_until_ready(ViewPallas((-1,))(xr))
    refr = xr.reshape(-1)
    assert yr.shape == refr.shape and bool(jnp.all(yr == refr))

    print("KERNEL_OK")
</pallas_src>

<mosaic_0001>
module attributes {stable_mosaic.version = 11 : i64} {
  func.func @_copy_kernel(%arg0: i32, %arg1: memref<1x2048xf32, #tpu.memory_space<vmem>>, %arg2: memref<1x2048xf32, #tpu.memory_space<vmem>>) attributes {dimension_semantics = [#tpu.dimension_semantics<parallel>], iteration_bounds = array<i64: 1>, scalar_prefetch = 0 : i64, scratch_operands = 0 : i64, tpu.core_type = #tpu.core_type<tc>, window_params = [{transform_indices = @transform_0, window_bounds = array<i64: 1, 2048>}, {transform_indices = @transform_1, window_bounds = array<i64: 1, 2048>}]} {
    %c0 = arith.constant 0 : index
    %c0_0 = arith.constant 0 : index
    %0 = vector.load %arg1[%c0, %c0_0] : memref<1x2048xf32, #tpu.memory_space<vmem>>, vector<1x2048xf32>
    %c0_1 = arith.constant 0 : index
    %c0_2 = arith.constant 0 : index
    %1 = vector.load %arg2[%c0_1, %c0_2] : memref<1x2048xf32, #tpu.memory_space<vmem>>, vector<1x2048xf32>
    tpu.vector_store %arg2[%c0_1, %c0_2], %0 {strides = array<i32>} : memref<1x2048xf32, #tpu.memory_space<vmem>>, vector<1x2048xf32>,
    return
  }
  func.func @transform_0(%arg0: i32) -> (i32, i32) {
    %c0_i32 = arith.constant 0 : i32
    %c0_i32_0 = arith.constant 0 : i32
    return %arg0, %c0_i32 : i32, i32
  }
  func.func @transform_1(%arg0: i32) -> (i32, i32) {
    %c0_i32 = arith.constant 0 : i32
    %c0_i32_0 = arith.constant 0 : i32
    return %arg0, %c0_i32 : i32, i32
  }
}

</mosaic_0001>

<llo_original>
// kernel: tpu_custom_call.1
$region0: #{tpu_custom_call.1}
  #allocation0 [shape = 'u32[]', space=smem, size = 0x4, offset = 0x4, fixed_abs, tag = 'smem constant byte address 0x4 - core index']
  #allocation1 [shape = 'u32[72,128]{1,0:T(1,128)}', space=vmem, size = 0x9000, scoped, tag = 'internal scratch']
  %s0 = inlined_call_operand.hbm [shape: f32[1,2048], index: 0, kind: input, shape index: {}]
  %s1 = inlined_call_operand.hbm [shape: f32[1,2048], index: 1, kind: output, shape index: {}]
  %s2 = sld [smem:[#allocation0]]
  $region18: #{tpu_custom_call.1} parent=0
    _
  %s4 = ssub.s32 1, %s2
  %s5 = scalar_select 0, %s4, %s2
  $region1: #{tpu_custom_call.1} parent=0
    #allocation2 [shape = 'u8[8192]{0}', space=vmem, size = 0x2000, scoped, tag = 'input window, operand 0, single buffered']
    #allocation3 [shape = 's32[1]{0}', space=sflag, size = 0x4, scoped, tag = 'scoped memory for tpu_custom_call.1']
    #allocation4 [shape = 's32[1]{0}', space=sflag, size = 0x4, scoped, tag = 'scoped memory for tpu_custom_call.1']
    #allocation5 [shape = 'u8[8192]{0}', space=vmem, size = 0x2000, scoped, tag = 'output window, operand 0, single buffered']
    %6 = vsyncpa [#allocation3], 0
    %7 = vsyncpa [#allocation4], 0
    // Predicated region
    $region2: #{tpu_custom_call.1} parent=1 // pred_check
      _
    $region3: #{tpu_custom_call.1} parent=1 // pred_check_branch
      %9 = sbr.rel (0) target = $region5
    $region4: #{tpu_custom_call.1} parent=1 // pred_region
      %11 = vsyncadd [#allocation3], 0
      %s13 = sshll.u32 %s0, 4
      %s14 = int_to_ptr.hbm [resolvable:$true] %s13
      %s15 = sshll.u32 [#allocation2], 4
      %s16 = int_to_ptr.vmem [resolvable:$true] %s15
      %18 = dma.hbm_to_vmem [thread:$0]  %s14, 256, %s16, [#allocation3]
    $region5: #{tpu_custom_call.1} parent=1 // pred_fallthru
      _
    // Predicated region
    $region6: #{tpu_custom_call.1} parent=1 // pred_check
      _
    $region7: #{tpu_custom_call.1} parent=1 // pred_check_branch
      %20 = sbr.rel (0) target = $region9
    $region8: #{tpu_custom_call.1} parent=1 // pred_region
      %22 = dma.done [#allocation3], 256
    $region9: #{tpu_custom_call.1} parent=1 // pred_fallthru
      _
    %v23 = vld [vmem:[#allocation2] sm:$0xff]
    %v24 = vld [vmem:[#allocation2 + $0x8] sm:$0xff]
    %25 = vst [vmem:[#allocation5] sm:$0xff] %v23
    %26 = vst [vmem:[#allocation5 + $0x8] sm:$0xff] %v24
    // Predicated region
    $region10: #{tpu_custom_call.1} parent=1 // pred_check
      _
    $region11: #{tpu_custom_call.1} parent=1 // pred_check_branch
      %28 = sbr.rel (0) target = $region13
    $region12: #{tpu_custom_call.1} parent=1 // pred_region
      %30 = vsyncadd [#allocation4], 0
      %s32 = sshll.u32 [#allocation5], 4
      %s33 = int_to_ptr.vmem [resolvable:$true] %s32
      %s34 = sshll.u32 %s1, 4
      %s35 = int_to_ptr.hbm [resolvable:$true] %s34
      %37 = dma.vmem_to_hbm [thread:$0]  %s33, 256, %s35, [#allocation4]
    $region13: #{tpu_custom_call.1} parent=1 // pred_fallthru
      _
    // Predicated region
    $region14: #{tpu_custom_call.1} parent=1 // pred_check
      _
    $region15: #{tpu_custom_call.1} parent=1 // pred_check_branch
      %39 = sbr.rel (0) target = $region17
    $region16: #{tpu_custom_call.1} parent=1 // pred_region
      %41 = dma.done [#allocation4], 256
    $region17: #{tpu_custom_call.1} parent=1 // pred_fallthru
      _
    %42 = vsyncpa [#allocation3], 1
    %43 = vsyncpa [#allocation4], 1

</llo_original>
